<compile_context>
chip_gen: v5e
topology: v5e:2x2
jax: 0.10.0
libtpu: 0.0.40
codegen_flags: <defaults>
</compile_context>

<pallas_src>
import functools

import jax
import jax.numpy as jnp
from jax.experimental import pallas as pl
from jax.experimental.pallas import tpu as pltpu


LATENT_PAD = 128   # latent dim padded to one full lane tile
HIDDEN_PAD = 128   # hidden 64-wide dim padded to one full lane tile
ROW_TILE = 8       # f32 sublane tile; batch rounded up to a multiple of this


# ----------------------------- kernel ---------------------------------------


def vae_kernel(
    x_ref, eps_ref, w128_ref, w256_ref, b_ref,
    out_ref, kl_ref,
    *, valid_rows, lp,
):
    f32 = jnp.float32
    x = x_ref[...]

    # Static slices of the packed weight stacks (row offsets are multiples of 8,
    # lane extent is full -> plain offset vector loads, no relayout).
    we1 = w128_ref[0:256, :]      # encoder.linear1  (256, 128)
    we2 = w128_ref[256:384, :]    # encoder.linear2  (128, 128) out-padded
    wd1 = w128_ref[384:512, :]    # decoder.linear1  (128, 128) in/out-padded
    wd2 = w128_ref[512:640, :]    # decoder.linear2  (128, 128) in-padded
    we34 = w256_ref[0:128, :]     # fused mu|logsig  (128, 256)
    wd3 = w256_ref[128:256, :]    # decoder.linear3  (128, 256)

    # Packed bias row, 128-lane-aligned segments.
    be1 = b_ref[:, 0:128]
    be2 = b_ref[:, 128:256]
    be34 = b_ref[:, 256:512]
    bd1 = b_ref[:, 512:640]
    bd2 = b_ref[:, 640:768]
    bd3 = b_ref[:, 768:1024]

    # ---- VariationalEncoder ----
    h = jnp.maximum(jnp.dot(x, we1, preferred_element_type=f32) + be1, 0.0)
    h = jnp.maximum(jnp.dot(h, we2, preferred_element_type=f32) + be2, 0.0)

    # Fused mu / log-sigma head: one (BP, 128) @ (128, 2*lp) matmul.
    head = jnp.dot(h, we34, preferred_element_type=f32) + be34
    mu = head[:, :lp]          # (BP, lp) lane-dense
    logsig = head[:, lp:]      # (BP, lp) lane-dense
    sigma = jnp.exp(logsig)

    # Reparameterization: z = mu + sigma * N(0,1) sample (eps supplied by host).
    # Padded latent lanes: mu = 0, logsig = 0 -> sigma = 1, eps = 0 -> z = 0.
    z = mu + sigma * eps_ref[...]

    # KL partial sums per latent lane, using the pre-exp log-sigma directly.
    # Padded latent lanes contribute a constant (0.5 * valid_rows) that the
    # wrapper drops via a lane slice, so no column mask is needed here.
    kl_elem = sigma * sigma + mu * mu - logsig - 0.5
    if valid_rows < x.shape[0]:   # only mask rows if the batch was padded
        rows = jax.lax.broadcasted_iota(jnp.int32, kl_elem.shape, 0)
        kl_elem = jnp.where(rows < valid_rows, kl_elem, 0.0)
    kl_ref[...] = jnp.sum(kl_elem, axis=0, keepdims=True)  # (1, lp) lane-dense

    # ---- Decoder ----
    d = jnp.maximum(jnp.dot(z, wd1, preferred_element_type=f32) + bd1, 0.0)
    d = jnp.maximum(jnp.dot(d, wd2, preferred_element_type=f32) + bd2, 0.0)
    out_ref[...] = jnp.dot(d, wd3, preferred_element_type=f32) + bd3


# ----------------------------- wrapper ---------------------------------------


def vae_forward(x, eps, packed_params, latent_dims):
    """x: (B, 256) f32, eps: (B, latent_dims) f32 standard-normal sample.

    Returns (reconstruction (B, 256), kl scalar).
    """
    B = x.shape[0]
    lp = LATENT_PAD
    bp = ((B + ROW_TILE - 1) // ROW_TILE) * ROW_TILE  # round up to f32 sublane tile

    # Only pad batch rows if B is not already a sublane multiple.
    xp = x if bp == B else jnp.zeros((bp, 256), jnp.float32).at[:B].set(x)
    # eps padded lane-wise so z / mu / sigma vregs stay lane-dense.
    epsp = jnp.zeros((bp, lp), jnp.float32).at[:B, :latent_dims].set(eps)

    w128, w256, biases = packed_params
    operands = (xp, epsp, w128, w256, biases)
    vmem_spec = pl.BlockSpec(memory_space=pltpu.MemorySpace.VMEM)

    # Advisory cost hint for the XLA scheduler (un-padded-ish sizes).
    flops = 2 * bp * (256 * 128 + 128 * 128 + 128 * 256
                      + 128 * 128 + 128 * 128 + 128 * 256)
    param_elems = int(w128.size) + int(w256.size) + int(biases.size)
    bytes_accessed = 4 * (bp * 256 + bp * lp + param_elems + bp * 256 + lp)
    cost = pl.CostEstimate(flops=flops, transcendentals=bp * lp,
                           bytes_accessed=bytes_accessed)

    kernel = functools.partial(vae_kernel, valid_rows=B, lp=lp)

    out_pad, kl_lanes = pl.pallas_call(
        kernel,
        out_shape=(
            jax.ShapeDtypeStruct((bp, 256), jnp.float32),
            jax.ShapeDtypeStruct((1, lp), jnp.float32),
        ),
        in_specs=[vmem_spec] * len(operands),
        out_specs=(vmem_spec, vmem_spec),
        cost_estimate=cost,
    )(*operands)

    recon = out_pad if bp == B else out_pad[:B]
    # Padded latent lanes carry a constant 0.5*valid_rows -> drop them here.
    kl = jnp.sum(kl_lanes[:, :latent_dims])
    return recon, kl


# ----------------------------- params ----------------------------------------


def init_linear(key, fan_in, fan_out):
    """PyTorch-default-style uniform init; weight stored as (in, out)."""
    kw, kb = jax.random.split(key)
    bound = 1.0 / jnp.sqrt(jnp.float32(fan_in))
    w = jax.random.uniform(kw, (fan_in, fan_out), jnp.float32, -bound, bound)
    b = jax.random.uniform(kb, (1, fan_out), jnp.float32, -bound, bound)
    return w, b


def init_vae_params(key, latent_dims):
    keys = jax.random.split(key, 7)
    we1, be1 = init_linear(keys[0], 256, 128)           # encoder.linear1
    we2, be2 = init_linear(keys[1], 128, 64)            # encoder.linear2
    we3, be3 = init_linear(keys[2], 64, latent_dims)    # encoder.linear3 (mu)
    we4, be4 = init_linear(keys[3], 64, latent_dims)    # encoder.linear4 (log sigma)
    wd1, bd1 = init_linear(keys[4], latent_dims, 64)    # decoder.linear1
    wd2, bd2 = init_linear(keys[5], 64, 128)            # decoder.linear2
    wd3, bd3 = init_linear(keys[6], 128, 256)           # decoder.linear3
    return (we1, be1, we2, be2, we3, be3, we4, be4,
            wd1, bd1, wd2, bd2, wd3, bd3)


def pack_params(raw_params, latent_dims, lp=LATENT_PAD, hp=HIDDEN_PAD):
    """Pack all weights into two lane-dense stacks and all biases into one row.

    Hidden-64 and latent dims are zero-padded to 128 lanes; zero weight
    columns + zero bias + relu keep the padded lanes exactly zero, so the
    forward result is unchanged.
    """
    (we1, be1, we2, be2, we3, be3, we4, be4,
     wd1, bd1, wd2, bd2, wd3, bd3) = raw_params

    # Encoder linear2: out cols 64 -> 128.
    we2p = jnp.zeros((128, hp), jnp.float32).at[:, :64].set(we2)
    # Fused mu|logsig head: contraction rows 64 -> 128, out cols = 2*lp.
    we34p = jnp.zeros((hp, 2 * lp), jnp.float32)
    we34p = we34p.at[:64, :latent_dims].set(we3).at[:64, lp:lp + latent_dims].set(we4)
    # Decoder linear1: in rows latent -> lp, out cols 64 -> 128.
    wd1p = jnp.zeros((lp, hp), jnp.float32).at[:latent_dims, :64].set(wd1)
    # Decoder linear2: contraction rows 64 -> 128.
    wd2p = jnp.zeros((hp, 128), jnp.float32).at[:64, :].set(wd2)

    # Two packed weight operands (one per column width).
    w128 = jnp.concatenate([we1, we2p, wd1p, wd2p], axis=0)   # (640, 128)
    w256 = jnp.concatenate([we34p, wd3], axis=0)              # (256, 256)

    # All biases in one 128-lane-aligned row.
    biases = jnp.zeros((1, 1024), jnp.float32)
    biases = (biases
              .at[:, 0:128].set(be1)
              .at[:, 128:128 + 64].set(be2)
              .at[:, 256:256 + latent_dims].set(be3)
              .at[:, 384:384 + latent_dims].set(be4)
              .at[:, 512:512 + 64].set(bd1)
              .at[:, 640:768].set(bd2)
              .at[:, 768:1024].set(bd3))

    return w128, w256, biases


# ----------------------------- reference --------------------------------------


def vae_reference(x, eps, raw_params):
    (we1, be1, we2, be2, we3, be3, we4, be4,
     wd1, bd1, wd2, bd2, wd3, bd3) = raw_params
    h = jnp.maximum(x @ we1 + be1, 0.0)
    h = jnp.maximum(h @ we2 + be2, 0.0)
    mu = h @ we3 + be3
    sigma = jnp.exp(h @ we4 + be4)
    z = mu + sigma * eps
    kl = jnp.sum(sigma ** 2 + mu ** 2 - jnp.log(sigma) - 0.5)
    d = jnp.maximum(z @ wd1 + bd1, 0.0)
    d = jnp.maximum(d @ wd2 + bd2, 0.0)
    return d @ wd3 + bd3, kl


# ----------------------------- main -------------------------------------------


if __name__ == "__main__":
    latent_dims = 32
    B = 8

    key = jax.random.PRNGKey(0)
    k_x, k_eps, k_par = jax.random.split(key, 3)

    # TODO(synk): torch.distributions.Normal sampling is done host-side here
    # (eps generated with jax.random and passed into the kernel).
    x = jax.random.normal(k_x, (B, 256), jnp.float32)
    eps = jax.random.normal(k_eps, (B, latent_dims), jnp.float32)
    raw_params = init_vae_params(k_par, latent_dims)
    packed_params = pack_params(raw_params, latent_dims)

    out, kl = vae_forward(x, eps, packed_params, latent_dims)
    out = jax.block_until_ready(out)
    kl = jax.block_until_ready(kl)

    ref_out, ref_kl = vae_reference(x, eps, raw_params)
    assert out.shape == (B, 256)
    assert jnp.allclose(out, ref_out, atol=1e-4, rtol=1e-4)
    assert jnp.allclose(kl, ref_kl, atol=1e-3, rtol=1e-4)

    print("KERNEL_OK")
</pallas_src>

<mosaic_0001>
module attributes {stable_mosaic.version = 11 : i64} {
  func.func @vae_kernel(%arg0: memref<8x256xf32, #tpu.memory_space<vmem>>, %arg1: memref<8x128xf32, #tpu.memory_space<vmem>>, %arg2: memref<640x128xf32, #tpu.memory_space<vmem>>, %arg3: memref<256x256xf32, #tpu.memory_space<vmem>>, %arg4: memref<1x1024xf32, #tpu.memory_space<vmem>>, %arg5: memref<8x256xf32, #tpu.memory_space<vmem>>, %arg6: memref<1x128xf32, #tpu.memory_space<vmem>>) attributes {dimension_semantics = [], scalar_prefetch = 0 : i64, scratch_operands = 0 : i64, tpu.core_type = #tpu.core_type<tc>} {
    %c0 = arith.constant 0 : index
    %c0_0 = arith.constant 0 : index
    %0 = vector.load %arg0[%c0, %c0_0] : memref<8x256xf32, #tpu.memory_space<vmem>>, vector<8x256xf32>
    %c0_1 = arith.constant 0 : index
    %c0_2 = arith.constant 0 : index
    %1 = vector.load %arg2[%c0_1, %c0_2] : memref<640x128xf32, #tpu.memory_space<vmem>>, vector<256x128xf32>
    %c256 = arith.constant 256 : index
    %c0_3 = arith.constant 0 : index
    %2 = vector.load %arg2[%c256, %c0_3] : memref<640x128xf32, #tpu.memory_space<vmem>>, vector<128x128xf32>
    %c384 = arith.constant 384 : index
    %c0_4 = arith.constant 0 : index
    %3 = vector.load %arg2[%c384, %c0_4] : memref<640x128xf32, #tpu.memory_space<vmem>>, vector<128x128xf32>
    %c512 = arith.constant 512 : index
    %c0_5 = arith.constant 0 : index
    %4 = vector.load %arg2[%c512, %c0_5] : memref<640x128xf32, #tpu.memory_space<vmem>>, vector<128x128xf32>
    %c0_6 = arith.constant 0 : index
    %c0_7 = arith.constant 0 : index
    %5 = vector.load %arg3[%c0_6, %c0_7] : memref<256x256xf32, #tpu.memory_space<vmem>>, vector<128x256xf32>
    %c128 = arith.constant 128 : index
    %c0_8 = arith.constant 0 : index
    %6 = vector.load %arg3[%c128, %c0_8] : memref<256x256xf32, #tpu.memory_space<vmem>>, vector<128x256xf32>
    %c0_9 = arith.constant 0 : index
    %c0_10 = arith.constant 0 : index
    %7 = vector.load %arg4[%c0_9, %c0_10] : memref<1x1024xf32, #tpu.memory_space<vmem>>, vector<1x128xf32>
    %c0_11 = arith.constant 0 : index
    %c128_12 = arith.constant 128 : index
    %8 = vector.load %arg4[%c0_11, %c128_12] : memref<1x1024xf32, #tpu.memory_space<vmem>>, vector<1x128xf32>
    %c0_13 = arith.constant 0 : index
    %c256_14 = arith.constant 256 : index
    %9 = vector.load %arg4[%c0_13, %c256_14] : memref<1x1024xf32, #tpu.memory_space<vmem>>, vector<1x256xf32>
    %c0_15 = arith.constant 0 : index
    %c512_16 = arith.constant 512 : index
    %10 = vector.load %arg4[%c0_15, %c512_16] : memref<1x1024xf32, #tpu.memory_space<vmem>>, vector<1x128xf32>
    %c0_17 = arith.constant 0 : index
    %c640 = arith.constant 640 : index
    %11 = vector.load %arg4[%c0_17, %c640] : memref<1x1024xf32, #tpu.memory_space<vmem>>, vector<1x128xf32>
    %c0_18 = arith.constant 0 : index
    %c768 = arith.constant 768 : index
    %12 = vector.load %arg4[%c0_18, %c768] : memref<1x1024xf32, #tpu.memory_space<vmem>>, vector<1x256xf32>
    %cst = arith.constant dense<0.000000e+00> : vector<8x128xf32>
    %13 = tpu.matmul %0, %1, %cst {dimension_numbers = #tpu.dot_dimension_numbers<[1], [0], [0], [1], [0, 0, 1, 1], [], []>} : vector<8x256xf32>, vector<256x128xf32>, vector<8x128xf32> -> vector<8x128xf32>
    %14 = vector.broadcast %7 : vector<1x128xf32> to vector<8x128xf32>
    %15 = arith.addf %13, %14 : vector<8x128xf32>
    %cst_19 = arith.constant 0.000000e+00 : f32
    %16 = vector.broadcast %cst_19 : f32 to vector<8x128xf32>
    %17 = arith.maximumf %15, %16 : vector<8x128xf32>
    %cst_20 = arith.constant dense<0.000000e+00> : vector<8x128xf32>
    %18 = tpu.matmul %17, %2, %cst_20 {dimension_numbers = #tpu.dot_dimension_numbers<[1], [0], [0], [1], [0, 0, 1, 1], [], []>} : vector<8x128xf32>, vector<128x128xf32>, vector<8x128xf32> -> vector<8x128xf32>
    %19 = vector.broadcast %8 : vector<1x128xf32> to vector<8x128xf32>
    %20 = arith.addf %18, %19 : vector<8x128xf32>
    %cst_21 = arith.constant 0.000000e+00 : f32
    %21 = vector.broadcast %cst_21 : f32 to vector<8x128xf32>
    %22 = arith.maximumf %20, %21 : vector<8x128xf32>
    %cst_22 = arith.constant dense<0.000000e+00> : vector<8x256xf32>
    %23 = tpu.matmul %22, %5, %cst_22 {dimension_numbers = #tpu.dot_dimension_numbers<[1], [0], [0], [1], [0, 0, 1, 1], [], []>} : vector<8x128xf32>, vector<128x256xf32>, vector<8x256xf32> -> vector<8x256xf32>
    %24 = vector.broadcast %9 : vector<1x256xf32> to vector<8x256xf32>
    %25 = arith.addf %23, %24 : vector<8x256xf32>
    %26 = vector.extract_strided_slice %25 {offsets = [0, 0], sizes = [8, 128], strides = [1, 1]} : vector<8x256xf32> to vector<8x128xf32>
    %27 = vector.extract_strided_slice %25 {offsets = [0, 128], sizes = [8, 128], strides = [1, 1]} : vector<8x256xf32> to vector<8x128xf32>
    %28 = math.exp %27 : vector<8x128xf32>
    %c0_23 = arith.constant 0 : index
    %c0_24 = arith.constant 0 : index
    %29 = vector.load %arg1[%c0_23, %c0_24] : memref<8x128xf32, #tpu.memory_space<vmem>>, vector<8x128xf32>
    %30 = arith.mulf %28, %29 : vector<8x128xf32>
    %31 = arith.addf %26, %30 : vector<8x128xf32>
    %32 = arith.mulf %28, %28 : vector<8x128xf32>
    %33 = arith.mulf %26, %26 : vector<8x128xf32>
    %34 = arith.addf %32, %33 : vector<8x128xf32>
    %35 = arith.subf %34, %27 : vector<8x128xf32>
    %cst_25 = arith.constant 5.000000e-01 : f32
    %36 = vector.broadcast %cst_25 : f32 to vector<8x128xf32>
    %37 = arith.subf %35, %36 : vector<8x128xf32>
    %cst_26 = arith.constant dense<0.000000e+00> : vector<128xf32>
    %38 = vector.multi_reduction <add>, %37, %cst_26 [0] : vector<8x128xf32> to vector<128xf32>
    %39 = vector.shape_cast %38 : vector<128xf32> to vector<1x128xf32>
    %c0_27 = arith.constant 0 : index
    %c0_28 = arith.constant 0 : index
    %40 = vector.load %arg6[%c0_27, %c0_28] : memref<1x128xf32, #tpu.memory_space<vmem>>, vector<1x128xf32>
    tpu.vector_store %arg6[%c0_27, %c0_28], %39 {strides = array<i32>} : memref<1x128xf32, #tpu.memory_space<vmem>>, vector<1x128xf32>,
    %cst_29 = arith.constant dense<0.000000e+00> : vector<8x128xf32>
    %41 = tpu.matmul %31, %3, %cst_29 {dimension_numbers = #tpu.dot_dimension_numbers<[1], [0], [0], [1], [0, 0, 1, 1], [], []>} : vector<8x128xf32>, vector<128x128xf32>, vector<8x128xf32> -> vector<8x128xf32>
    %42 = vector.broadcast %10 : vector<1x128xf32> to vector<8x128xf32>
    %43 = arith.addf %41, %42 : vector<8x128xf32>
    %cst_30 = arith.constant 0.000000e+00 : f32
    %44 = vector.broadcast %cst_30 : f32 to vector<8x128xf32>
    %45 = arith.maximumf %43, %44 : vector<8x128xf32>
    %cst_31 = arith.constant dense<0.000000e+00> : vector<8x128xf32>
    %46 = tpu.matmul %45, %4, %cst_31 {dimension_numbers = #tpu.dot_dimension_numbers<[1], [0], [0], [1], [0, 0, 1, 1], [], []>} : vector<8x128xf32>, vector<128x128xf32>, vector<8x128xf32> -> vector<8x128xf32>
    %47 = vector.broadcast %11 : vector<1x128xf32> to vector<8x128xf32>
    %48 = arith.addf %46, %47 : vector<8x128xf32>
    %cst_32 = arith.constant 0.000000e+00 : f32
    %49 = vector.broadcast %cst_32 : f32 to vector<8x128xf32>
    %50 = arith.maximumf %48, %49 : vector<8x128xf32>
    %cst_33 = arith.constant dense<0.000000e+00> : vector<8x256xf32>
    %51 = tpu.matmul %50, %6, %cst_33 {dimension_numbers = #tpu.dot_dimension_numbers<[1], [0], [0], [1], [0, 0, 1, 1], [], []>} : vector<8x128xf32>, vector<128x256xf32>, vector<8x256xf32> -> vector<8x256xf32>
    %52 = vector.broadcast %12 : vector<1x256xf32> to vector<8x256xf32>
    %53 = arith.addf %51, %52 : vector<8x256xf32>
    %c0_34 = arith.constant 0 : index
    %c0_35 = arith.constant 0 : index
    %54 = vector.load %arg5[%c0_34, %c0_35] : memref<8x256xf32, #tpu.memory_space<vmem>>, vector<8x256xf32>
    tpu.vector_store %arg5[%c0_34, %c0_35], %53 {strides = array<i32>} : memref<8x256xf32, #tpu.memory_space<vmem>>, vector<8x256xf32>,
    return
  }
}

</mosaic_0001>

<llo_original>
// kernel: tpu_custom_call.1
$region0: #{tpu_custom_call.1}
  #allocation0 [shape = 'u32[]', space=smem, size = 0x4, offset = 0x4, fixed_abs, tag = 'smem constant byte address 0x4 - core index']
  #allocation1 [shape = 'u32[72,128]{1,0:T(1,128)}', space=vmem, size = 0x9000, scoped, tag = 'internal scratch']
  %s0 = inlined_call_operand.hbm [shape: f32[8,256], index: 0, kind: input, shape index: {}]
  %s1 = inlined_call_operand.hbm [shape: f32[8,128], index: 1, kind: input, shape index: {}]
  %s2 = inlined_call_operand.hbm [shape: f32[640,128], index: 2, kind: input, shape index: {}]
  %s3 = inlined_call_operand.hbm [shape: f32[256,256], index: 3, kind: input, shape index: {}]
  %s4 = inlined_call_operand.hbm [shape: f32[1,1024], index: 4, kind: input, shape index: {}]
  %s5 = inlined_call_operand.hbm [shape: f32[8,256], index: 5, kind: output, shape index: {0}]
  %s6 = inlined_call_operand.hbm [shape: f32[1,128], index: 6, kind: output, shape index: {1}]
  %7 = xla_tuple %s5, %s6
  %s8 = sld [smem:[#allocation0]]
  $region58: #{tpu_custom_call.1} parent=0
    _
  %s10 = ssub.s32 1, %s8
  %s11 = scalar_select 0, %s10, %s8
  $region1: #{tpu_custom_call.1} parent=0
    #allocation2 [shape = 'u8[8192]{0}', space=vmem, size = 0x2000, scoped, tag = 'input window, operand 0, single buffered']
    #allocation3 [shape = 's32[1]{0}', space=sflag, size = 0x4, scoped, tag = 'scoped memory for tpu_custom_call.1']
    #allocation4 [shape = 's32[1]{0}', space=sflag, size = 0x4, scoped, tag = 'scoped memory for tpu_custom_call.1']
    #allocation5 [shape = 'u8[4096]{0}', space=vmem, size = 0x1000, scoped, tag = 'input window, operand 1, single buffered']
    #allocation6 [shape = 's32[1]{0}', space=sflag, size = 0x4, scoped, tag = 'scoped memory for tpu_custom_call.1']
    #allocation7 [shape = 'u8[327680]{0}', space=vmem, size = 0x50000, scoped, tag = 'input window, operand 2, single buffered']
    #allocation8 [shape = 'u8[262144]{0}', space=vmem, size = 0x40000, scoped, tag = 'input window, operand 3, single buffered']
    #allocation9 [shape = 's32[1]{0}', space=sflag, size = 0x4, scoped, tag = 'scoped memory for tpu_custom_call.1']
    #allocation10 [shape = 'u8[4096]{0}', space=vmem, size = 0x1000, scoped, tag = 'input window, operand 4, single buffered']
    #allocation11 [shape = 'u8[8192]{0}', space=vmem, size = 0x2000, scoped, tag = 'output window, operand 0, single buffered']
    #allocation12 [shape = 'u8[512]{0}', space=vmem, size = 0x400, scoped, tag = 'output window, operand 1, single buffered']
    #allocation13 [shape = 's32[1]{0}', space=sflag, size = 0x4, scoped, tag = 'scoped memory for tpu_custom_call.1']
    %12 = vsyncpa [#allocation3], 0
    %13 = vsyncpa [#allocation6], 0
    %14 = vsyncpa [#allocation9], 0
    %15 = vsyncpa [#allocation4], 0
    %16 = vsyncpa [#allocation13], 0
    // Predicated region
    $region2: #{tpu_custom_call.1} parent=1 // pred_check
      _
    $region3: #{tpu_custom_call.1} parent=1 // pred_check_branch
      %18 = sbr.rel (0) target = $region5
    $region4: #{tpu_custom_call.1} parent=1 // pred_region
      %20 = vsyncadd [#allocation3], 0
      %s22 = sshll.u32 %s0, 4
      %s23 = int_to_ptr.hbm [resolvable:$true] %s22
      %s24 = sshll.u32 [#allocation2], 4
      %s25 = int_to_ptr.vmem [resolvable:$true] %s24
      %27 = dma.hbm_to_vmem [thread:$0]  %s23, 256, %s25, [#allocation3]
    $region5: #{tpu_custom_call.1} parent=1 // pred_fallthru
      _
    // Predicated region
    $region6: #{tpu_custom_call.1} parent=1 // pred_check
      _
    $region7: #{tpu_custom_call.1} parent=1 // pred_check_branch
      %29 = sbr.rel (0) target = $region9
    $region8: #{tpu_custom_call.1} parent=1 // pred_region
      %31 = vsyncadd [#allocation6], 0
      %s33 = sshll.u32 %s1, 4
      %s34 = int_to_ptr.hbm [resolvable:$true] %s33
      %s35 = sshll.u32 [#allocation5], 4
      %s36 = int_to_ptr.vmem [resolvable:$true] %s35
      %38 = dma.hbm_to_vmem [thread:$0]  %s34, 128, %s36, [#allocation6]
    $region9: #{tpu_custom_call.1} parent=1 // pred_fallthru
      _
    // Predicated region
    $region10: #{tpu_custom_call.1} parent=1 // pred_check
      _
    $region11: #{tpu_custom_call.1} parent=1 // pred_check_branch
      %40 = sbr.rel (0) target = $region13
    $region12: #{tpu_custom_call.1} parent=1 // pred_region
      %42 = vsyncadd [#allocation6], 0
      %s43 = sshll.u32 %s2, 4
      %s44 = int_to_ptr.hbm [resolvable:$true] %s43
      %s45 = sshll.u32 [#allocation7], 4
      %s46 = int_to_ptr.vmem [resolvable:$true] %s45
      %51 = dma.hbm_to_vmem [thread:$0]  %s44, 10240, %s46, [#allocation6], 128, 128, 8
    $region13: #{tpu_custom_call.1} parent=1 // pred_fallthru
      _
    // Predicated region
    $region14: #{tpu_custom_call.1} parent=1 // pred_check
      _
    $region15: #{tpu_custom_call.1} parent=1 // pred_check_branch
      %53 = sbr.rel (0) target = $region17
    $region16: #{tpu_custom_call.1} parent=1 // pred_region
      %55 = vsyncadd [#allocation9], 0
      %s56 = sshll.u32 %s3, 4
      %s57 = int_to_ptr.hbm [resolvable:$true] %s56
      %s58 = sshll.u32 [#allocation8], 4
      %s59 = int_to_ptr.vmem [resolvable:$true] %s58
      %64 = dma.hbm_to_vmem [thread:$0]  %s57, 8192, %s59, [#allocation9], 256, 256, 16
    $region17: #{tpu_custom_call.1} parent=1 // pred_fallthru
      _
    // Predicated region
    $region18: #{tpu_custom_call.1} parent=1 // pred_check
      _
    $region19: #{tpu_custom_call.1} parent=1 // pred_check_branch
      %66 = sbr.rel (0) target = $region21
    $region20: #{tpu_custom_call.1} parent=1 // pred_region
      %68 = vsyncadd [#allocation9], 0
      %s70 = sshll.u32 %s4, 4
      %s71 = int_to_ptr.hbm [resolvable:$true] %s70
      %s72 = sshll.u32 [#allocation10], 4
      %s73 = int_to_ptr.vmem [resolvable:$true] %s72
      %75 = dma.hbm_to_vmem [thread:$0]  %s71, 128, %s73, [#allocation9]
    $region21: #{tpu_custom_call.1} parent=1 // pred_fallthru
      _
    // Predicated region
    $region22: #{tpu_custom_call.1} parent=1 // pred_check
      _
    $region23: #{tpu_custom_call.1} parent=1 // pred_check_branch
      %77 = sbr.rel (0) target = $region25
    $region24: #{tpu_custom_call.1} parent=1 // pred_region
      %79 = dma.done [#allocation3], 256
    $region25: #{tpu_custom_call.1} parent=1 // pred_fallthru
      _
    // Predicated region
    $region26: #{tpu_custom_call.1} parent=1 // pred_check
      _
    $region27: #{tpu_custom_call.1} parent=1 // pred_check_branch
      %81 = sbr.rel (0) target = $region29
    $region28: #{tpu_custom_call.1} parent=1 // pred_region
      %83 = dma.done [#allocation6], 128
    $region29: #{tpu_custom_call.1} parent=1 // pred_fallthru
      _
    // Predicated region
    $region30: #{tpu_custom_call.1} parent=1 // pred_check
      _
    $region31: #{tpu_custom_call.1} parent=1 // pred_check_branch
      %85 = sbr.rel (0) target = $region33
    $region32: #{tpu_custom_call.1} parent=1 // pred_region
      %87 = dma.done [#allocation6], 10240
    $region33: #{tpu_custom_call.1} parent=1 // pred_fallthru
      _
    // Predicated region
    $region34: #{tpu_custom_call.1} parent=1 // pred_check
      _
    $region35: #{tpu_custom_call.1} parent=1 // pred_check_branch
      %89 = sbr.rel (0) target = $region37
    $region36: #{tpu_custom_call.1} parent=1 // pred_region
      %91 = dma.done [#allocation9], 8192
    $region37: #{tpu_custom_call.1} parent=1 // pred_fallthru
      _
    // Predicated region
    $region38: #{tpu_custom_call.1} parent=1 // pred_check
      _
    $region39: #{tpu_custom_call.1} parent=1 // pred_check_branch
      %93 = sbr.rel (0) target = $region41
    $region40: #{tpu_custom_call.1} parent=1 // pred_region
      %95 = dma.done [#allocation9], 128
    $region41: #{tpu_custom_call.1} parent=1 // pred_fallthru
      _
    %v96 = vld [vmem:[#allocation2] sm:$0xff]
    %v97 = vld [vmem:[#allocation2 + $0x8] sm:$0xff]
    %v98 = vld [vmem:[#allocation7] sm:$0xff]
    %v99 = vld [vmem:[#allocation7 + $0x8] sm:$0xff]
    %v100 = vld [vmem:[#allocation7 + $0x10] sm:$0xff]
    %v101 = vld [vmem:[#allocation7 + $0x18] sm:$0xff]
    %v102 = vld [vmem:[#allocation7 + $0x20] sm:$0xff]
    %v103 = vld [vmem:[#allocation7 + $0x28] sm:$0xff]
    %v104 = vld [vmem:[#allocation7 + $0x30] sm:$0xff]
    %v105 = vld [vmem:[#allocation7 + $0x38] sm:$0xff]
    %v106 = vld [vmem:[#allocation7 + $0x40] sm:$0xff]
    %v107 = vld [vmem:[#allocation7 + $0x48] sm:$0xff]
    %v108 = vld [vmem:[#allocation7 + $0x50] sm:$0xff]
    %v109 = vld [vmem:[#allocation7 + $0x58] sm:$0xff]
    %v110 = vld [vmem:[#allocation7 + $0x60] sm:$0xff]
    %v111 = vld [vmem:[#allocation7 + $0x68] sm:$0xff]
    %v112 = vld [vmem:[#allocation7 + $0x70] sm:$0xff]
    %v113 = vld [vmem:[#allocation7 + $0x78] sm:$0xff]
    %v114 = vld [vmem:[#allocation7 + $0x80] sm:$0xff]
    %v115 = vld [vmem:[#allocation7 + $0x88] sm:$0xff]
    %v116 = vld [vmem:[#allocation7 + $0x90] sm:$0xff]
    %v117 = vld [vmem:[#allocation7 + $0x98] sm:$0xff]
    %v118 = vld [vmem:[#allocation7 + $0xa0] sm:$0xff]
    %v119 = vld [vmem:[#allocation7 + $0xa8] sm:$0xff]
    %v120 = vld [vmem:[#allocation7 + $0xb0] sm:$0xff]
    %v121 = vld [vmem:[#allocation7 + $0xb8] sm:$0xff]
    %v122 = vld [vmem:[#allocation7 + $0xc0] sm:$0xff]
    %v123 = vld [vmem:[#allocation7 + $0xc8] sm:$0xff]
    %v124 = vld [vmem:[#allocation7 + $0xd0] sm:$0xff]
    %v125 = vld [vmem:[#allocation7 + $0xd8] sm:$0xff]
    %v126 = vld [vmem:[#allocation7 + $0xe0] sm:$0xff]
    %v127 = vld [vmem:[#allocation7 + $0xe8] sm:$0xff]
    %v128 = vld [vmem:[#allocation7 + $0xf0] sm:$0xff]
    %v129 = vld [vmem:[#allocation7 + $0xf8] sm:$0xff]
    %v130 = vld [vmem:[#allocation7 + $0x100] sm:$0xff]
    %v131 = vld [vmem:[#allocation7 + $0x108] sm:$0xff]
    %v132 = vld [vmem:[#allocation7 + $0x110] sm:$0xff]
    %v133 = vld [vmem:[#allocation7 + $0x118] sm:$0xff]
    %v134 = vld [vmem:[#allocation7 + $0x120] sm:$0xff]
    %v135 = vld [vmem:[#allocation7 + $0x128] sm:$0xff]
    %v136 = vld [vmem:[#allocation7 + $0x130] sm:$0xff]
    %v137 = vld [vmem:[#allocation7 + $0x138] sm:$0xff]
    %v138 = vld [vmem:[#allocation7 + $0x140] sm:$0xff]
    %v139 = vld [vmem:[#allocation7 + $0x148] sm:$0xff]
    %v140 = vld [vmem:[#allocation7 + $0x150] sm:$0xff]
    %v141 = vld [vmem:[#allocation7 + $0x158] sm:$0xff]
    %v142 = vld [vmem:[#allocation7 + $0x160] sm:$0xff]
    %v143 = vld [vmem:[#allocation7 + $0x168] sm:$0xff]
    %v144 = vld [vmem:[#allocation7 + $0x170] sm:$0xff]
    %v145 = vld [vmem:[#allocation7 + $0x178] sm:$0xff]
    %v146 = vld [vmem:[#allocation7 + $0x180] sm:$0xff]
    %v147 = vld [vmem:[#allocation7 + $0x188] sm:$0xff]
    %v148 = vld [vmem:[#allocation7 + $0x190] sm:$0xff]
    %v149 = vld [vmem:[#allocation7 + $0x198] sm:$0xff]
    %v150 = vld [vmem:[#allocation7 + $0x1a0] sm:$0xff]
    %v151 = vld [vmem:[#allocation7 + $0x1a8] sm:$0xff]
    %v152 = vld [vmem:[#allocation7 + $0x1b0] sm:$0xff]
    %v153 = vld [vmem:[#allocation7 + $0x1b8] sm:$0xff]
    %v154 = vld [vmem:[#allocation7 + $0x1c0] sm:$0xff]
    %v155 = vld [vmem:[#allocation7 + $0x1c8] sm:$0xff]
    %v156 = vld [vmem:[#allocation7 + $0x1d0] sm:$0xff]
    %v157 = vld [vmem:[#allocation7 + $0x1d8] sm:$0xff]
    %v158 = vld [vmem:[#allocation7 + $0x1e0] sm:$0xff]
    %v159 = vld [vmem:[#allocation7 + $0x1e8] sm:$0xff]
    %v160 = vld [vmem:[#allocation7 + $0x1f0] sm:$0xff]
    %v161 = vld [vmem:[#allocation7 + $0x1f8] sm:$0xff]
    %v162 = vld [vmem:[#allocation7 + $0x200] sm:$0xff]
    %v163 = vld [vmem:[#allocation7 + $0x208] sm:$0xff]
    %v164 = vld [vmem:[#allocation7 + $0x210] sm:$0xff]
    %v165 = vld [vmem:[#allocation7 + $0x218] sm:$0xff]
    %v166 = vld [vmem:[#allocation7 + $0x220] sm:$0xff]
    %v167 = vld [vmem:[#allocation7 + $0x228] sm:$0xff]
    %v168 = vld [vmem:[#allocation7 + $0x230] sm:$0xff]
    %v169 = vld [vmem:[#allocation7 + $0x238] sm:$0xff]
    %v170 = vld [vmem:[#allocation7 + $0x240] sm:$0xff]
    %v171 = vld [vmem:[#allocation7 + $0x248] sm:$0xff]
    %v172 = vld [vmem:[#allocation7 + $0x250] sm:$0xff]
    %v173 = vld [vmem:[#allocation7 + $0x258] sm:$0xff]
    %v174 = vld [vmem:[#allocation7 + $0x260] sm:$0xff]
    %v175 = vld [vmem:[#allocation7 + $0x268] sm:$0xff]
    %v176 = vld [vmem:[#allocation7 + $0x270] sm:$0xff]
    %v177 = vld [vmem:[#allocation7 + $0x278] sm:$0xff]
    %v178 = vld [vmem:[#allocation8] sm:$0xff]
    %v179 = vld [vmem:[#allocation8 + $0x8] sm:$0xff]
    %v180 = vld [vmem:[#allocation8 + $0x10] sm:$0xff]
    %v181 = vld [vmem:[#allocation8 + $0x18] sm:$0xff]
    %v182 = vld [vmem:[#allocation8 + $0x20] sm:$0xff]
    %v183 = vld [vmem:[#allocation8 + $0x28] sm:$0xff]
    %v184 = vld [vmem:[#allocation8 + $0x30] sm:$0xff]
    %v185 = vld [vmem:[#allocation8 + $0x38] sm:$0xff]
    %v186 = vld [vmem:[#allocation8 + $0x40] sm:$0xff]
    %v187 = vld [vmem:[#allocation8 + $0x48] sm:$0xff]
    %v188 = vld [vmem:[#allocation8 + $0x50] sm:$0xff]
    %v189 = vld [vmem:[#allocation8 + $0x58] sm:$0xff]
    %v190 = vld [vmem:[#allocation8 + $0x60] sm:$0xff]
    %v191 = vld [vmem:[#allocation8 + $0x68] sm:$0xff]
    %v192 = vld [vmem:[#allocation8 + $0x70] sm:$0xff]
    %v193 = vld [vmem:[#allocation8 + $0x78] sm:$0xff]
    %v194 = vld [vmem:[#allocation8 + $0x80] sm:$0xff]
    %v195 = vld [vmem:[#allocation8 + $0x88] sm:$0xff]
    %v196 = vld [vmem:[#allocation8 + $0x90] sm:$0xff]
    %v197 = vld [vmem:[#allocation8 + $0x98] sm:$0xff]
    %v198 = vld [vmem:[#allocation8 + $0xa0] sm:$0xff]
    %v199 = vld [vmem:[#allocation8 + $0xa8] sm:$0xff]
    %v200 = vld [vmem:[#allocation8 + $0xb0] sm:$0xff]
    %v201 = vld [vmem:[#allocation8 + $0xb8] sm:$0xff]
    %v202 = vld [vmem:[#allocation8 + $0xc0] sm:$0xff]
    %v203 = vld [vmem:[#allocation8 + $0xc8] sm:$0xff]
    %v204 = vld [vmem:[#allocation8 + $0xd0] sm:$0xff]
    %v205 = vld [vmem:[#allocation8 + $0xd8] sm:$0xff]
    %v206 = vld [vmem:[#allocation8 + $0xe0] sm:$0xff]
    %v207 = vld [vmem:[#allocation8 + $0xe8] sm:$0xff]
    %v208 = vld [vmem:[#allocation8 + $0xf0] sm:$0xff]
    %v209 = vld [vmem:[#allocation8 + $0xf8] sm:$0xff]
    %v210 = vld [vmem:[#allocation8 + $0x100] sm:$0xff]
    %v211 = vld [vmem:[#allocation8 + $0x108] sm:$0xff]
    %v212 = vld [vmem:[#allocation8 + $0x110] sm:$0xff]
    %v213 = vld [vmem:[#allocation8 + $0x118] sm:$0xff]
    %v214 = vld [vmem:[#allocation8 + $0x120] sm:$0xff]
    %v215 = vld [vmem:[#allocation8 + $0x128] sm:$0xff]
    %v216 = vld [vmem:[#allocation8 + $0x130] sm:$0xff]
    %v217 = vld [vmem:[#allocation8 + $0x138] sm:$0xff]
    %v218 = vld [vmem:[#allocation8 + $0x140] sm:$0xff]
    %v219 = vld [vmem:[#allocation8 + $0x148] sm:$0xff]
    %v220 = vld [vmem:[#allocation8 + $0x150] sm:$0xff]
    %v221 = vld [vmem:[#allocation8 + $0x158] sm:$0xff]
    %v222 = vld [vmem:[#allocation8 + $0x160] sm:$0xff]
    %v223 = vld [vmem:[#allocation8 + $0x168] sm:$0xff]
    %v224 = vld [vmem:[#allocation8 + $0x170] sm:$0xff]
    %v225 = vld [vmem:[#allocation8 + $0x178] sm:$0xff]
    %v226 = vld [vmem:[#allocation8 + $0x180] sm:$0xff]
    %v227 = vld [vmem:[#allocation8 + $0x188] sm:$0xff]
    %v228 = vld [vmem:[#allocation8 + $0x190] sm:$0xff]
    %v229 = vld [vmem:[#allocation8 + $0x198] sm:$0xff]
    %v230 = vld [vmem:[#allocation8 + $0x1a0] sm:$0xff]
    %v231 = vld [vmem:[#allocation8 + $0x1a8] sm:$0xff]
    %v232 = vld [vmem:[#allocation8 + $0x1b0] sm:$0xff]
    %v233 = vld [vmem:[#allocation8 + $0x1b8] sm:$0xff]
    %v234 = vld [vmem:[#allocation8 + $0x1c0] sm:$0xff]
    %v235 = vld [vmem:[#allocation8 + $0x1c8] sm:$0xff]
    %v236 = vld [vmem:[#allocation8 + $0x1d0] sm:$0xff]
    %v237 = vld [vmem:[#allocation8 + $0x1d8] sm:$0xff]
    %v238 = vld [vmem:[#allocation8 + $0x1e0] sm:$0xff]
    %v239 = vld [vmem:[#allocation8 + $0x1e8] sm:$0xff]
    %v240 = vld [vmem:[#allocation8 + $0x1f0] sm:$0xff]
    %v241 = vld [vmem:[#allocation8 + $0x1f8] sm:$0xff]
    %v242 = vld [vmem:[#allocation10] sm:$0x1]
    %v243 = vld [vmem:[#allocation10 + $0x1] sm:$0x1]
    %v244 = vld [vmem:[#allocation10 + $0x2] sm:$0x3]
    %v245 = vld [vmem:[#allocation10 + $0x4] sm:$0x1]
    %v246 = vld [vmem:[#allocation10 + $0x5] sm:$0x1]
    %v247 = vld [vmem:[#allocation10 + $0x6] sm:$0x3]
    %v249 = vperm.slane %v242, 0
    %251 = vmatpush.msra.mxu0 %v113
    %252 = vmatpush.msra.mxu0 %v112
    %253 = vmatpush.msra.mxu0 %v111
    %254 = vmatpush.msra.mxu0 %v110
    %255 = vmatpush.msra.mxu0 %v109
    %256 = vmatpush.msra.mxu0 %v108
    %257 = vmatpush.msra.mxu0 %v107
    %258 = vmatpush.msra.mxu0 %v106
    %259 = vmatpush.msra.mxu0 %v105
    %260 = vmatpush.msra.mxu0 %v104
    %261 = vmatpush.msra.mxu0 %v103
    %262 = vmatpush.msra.mxu0 %v102
    %263 = vmatpush.msra.mxu0 %v101
    %264 = vmatpush.msra.mxu0 %v100
    %265 = vmatpush.msra.mxu0 %v99
    %266 = vmatpush.msra.mxu0 %v98
    %267 = vmatmul.f32.gmra.mxu0 %v96
    %v268 = vpop.f32.mrf.mxu0
    %v269 = vadd.f32 %v249, %v268
    %270 = vdwg.mxu0
    %271 = vmatpush.msra.mxu0 %v129
    %272 = vmatpush.msra.mxu0 %v128
    %273 = vmatpush.msra.mxu0 %v127
    %274 = vmatpush.msra.mxu0 %v126
    %275 = vmatpush.msra.mxu0 %v125
    %276 = vmatpush.msra.mxu0 %v124
    %277 = vmatpush.msra.mxu0 %v123
    %278 = vmatpush.msra.mxu0 %v122
    %279 = vmatpush.msra.mxu0 %v121
    %280 = vmatpush.msra.mxu0 %v120
    %281 = vmatpush.msra.mxu0 %v119
    %282 = vmatpush.msra.mxu0 %v118
    %283 = vmatpush.msra.mxu0 %v117
    %284 = vmatpush.msra.mxu0 %v116
    %285 = vmatpush.msra.mxu0 %v115
    %286 = vmatpush.msra.mxu0 %v114
    %287 = vmatmul.f32.gmra.mxu0 %v97
    %v288 = vpop.f32.mrf.mxu0
    %v289 = vadd.f32 %v269, %v288
    %290 = vdwg.mxu0
    %v291 = vmax.f32 %v289, 0.0
    %v293 = vperm.slane %v243, 0
    %295 = vmatpush.msra.mxu0 %v145
    %296 = vmatpush.msra.mxu0 %v144
    %297 = vmatpush.msra.mxu0 %v143
    %298 = vmatpush.msra.mxu0 %v142
    %299 = vmatpush.msra.mxu0 %v141
    %300 = vmatpush.msra.mxu0 %v140
    %301 = vmatpush.msra.mxu0 %v139
    %302 = vmatpush.msra.mxu0 %v138
    %303 = vmatpush.msra.mxu0 %v137
    %304 = vmatpush.msra.mxu0 %v136
    %305 = vmatpush.msra.mxu0 %v135
    %306 = vmatpush.msra.mxu0 %v134
    %307 = vmatpush.msra.mxu0 %v133
    %308 = vmatpush.msra.mxu0 %v132
    %309 = vmatpush.msra.mxu0 %v131
    %310 = vmatpush.msra.mxu0 %v130
    %311 = vmatmul.f32.gmra.mxu0 %v291
    %v312 = vpop.f32.mrf.mxu0
    %v313 = vadd.f32 %v293, %v312
    %314 = vdwg.mxu0
    %v315 = vmax.f32 %v313, 0.0
    %v317 = vperm.slane %v244, 0
    %v318 = vperm.slane %v244, 1
    %321 = vmatpush.msra.mxu0 %v208
    %322 = vmatpush.msra.mxu0 %v206
    %323 = vmatpush.msra.mxu0 %v204
    %324 = vmatpush.msra.mxu0 %v202
    %325 = vmatpush.msra.mxu0 %v200
    %326 = vmatpush.msra.mxu0 %v198
    %327 = vmatpush.msra.mxu0 %v196
    %328 = vmatpush.msra.mxu0 %v194
    %329 = vmatpush.msra.mxu0 %v192
    %330 = vmatpush.msra.mxu0 %v190
    %331 = vmatpush.msra.mxu0 %v188
    %332 = vmatpush.msra.mxu0 %v186
    %333 = vmatpush.msra.mxu0 %v184
    %334 = vmatpush.msra.mxu0 %v182
    %335 = vmatpush.msra.mxu0 %v180
    %336 = vmatpush.msra.mxu0 %v178
    %337 = vmatmul.f32.gmra.mxu0 %v315
    %v338 = vpop.f32.mrf.mxu0
    %v339 = vadd.f32 %v317, %v338
    %340 = vdwg.mxu0
    %341 = vmatpush.msra.mxu0 %v209
    %342 = vmatpush.msra.mxu0 %v207
    %343 = vmatpush.msra.mxu0 %v205
    %344 = vmatpush.msra.mxu0 %v203
    %345 = vmatpush.msra.mxu0 %v201
    %346 = vmatpush.msra.mxu0 %v199
    %347 = vmatpush.msra.mxu0 %v197
    %348 = vmatpush.msra.mxu0 %v195
    %349 = vmatpush.msra.mxu0 %v193
    %350 = vmatpush.msra.mxu0 %v191
    %351 = vmatpush.msra.mxu0 %v189
    %352 = vmatpush.msra.mxu0 %v187
    %353 = vmatpush.msra.mxu0 %v185
    %354 = vmatpush.msra.mxu0 %v183
    %355 = vmatpush.msra.mxu0 %v181
    %356 = vmatpush.msra.mxu0 %v179
    %357 = vmatmul.f32.gmra.mxu0 %v315
    %v358 = vpop.f32.mrf.mxu0
    %v359 = vadd.f32 %v318, %v358
    %360 = vdwg.mxu0
    %v361 = vmul.f32 %v359, 1.442695
    %v362 = vpow.pop %v361
    %v363 = vld [vmem:[#allocation5] sm:$0xff]
    %v364 = vmul.f32 %v362, %v363
    %v365 = vadd.f32 %v339, %v364
    %v366 = vmul.f32 %v362, %v362
    %v367 = vmul.f32 %v339, %v339
    %v368 = vadd.f32 %v366, %v367
    %v369 = vsub.f32 %v368, %v359
    %v370 = vsub.f32 %v369, 0.5
    %v371 = vrot.slane %v370, 4
    %v372 = vadd.f32 %v370, %v371
    %v373 = vrot.slane %v372, 2
    %v374 = vadd.f32 %v372, %v373
    %v375 = vrot.slane %v374, 1
    %v376 = vadd.f32 %v374, %v375
    %377 = vst [vmem:[#allocation12] sm:$0x1] %v376
    %v379 = vperm.slane %v245, 0
    %381 = vmatpush.msra.mxu0 %v161
    %382 = vmatpush.msra.mxu0 %v160
    %383 = vmatpush.msra.mxu0 %v159
    %384 = vmatpush.msra.mxu0 %v158
    %385 = vmatpush.msra.mxu0 %v157
    %386 = vmatpush.msra.mxu0 %v156
    %387 = vmatpush.msra.mxu0 %v155
    %388 = vmatpush.msra.mxu0 %v154
    %389 = vmatpush.msra.mxu0 %v153
    %390 = vmatpush.msra.mxu0 %v152
    %391 = vmatpush.msra.mxu0 %v151
    %392 = vmatpush.msra.mxu0 %v150
    %393 = vmatpush.msra.mxu0 %v149
    %394 = vmatpush.msra.mxu0 %v148
    %395 = vmatpush.msra.mxu0 %v147
    %396 = vmatpush.msra.mxu0 %v146
    %397 = vmatmul.f32.gmra.mxu0 %v365
    %v398 = vpop.f32.mrf.mxu0
    %v399 = vadd.f32 %v379, %v398
    %400 = vdwg.mxu0
    %v401 = vmax.f32 %v399, 0.0
    %v403 = vperm.slane %v246, 0
    %405 = vmatpush.msra.mxu0 %v177
    %406 = vmatpush.msra.mxu0 %v176
    %407 = vmatpush.msra.mxu0 %v175
    %408 = vmatpush.msra.mxu0 %v174
    %409 = vmatpush.msra.mxu0 %v173
    %410 = vmatpush.msra.mxu0 %v172
    %411 = vmatpush.msra.mxu0 %v171
    %412 = vmatpush.msra.mxu0 %v170
    %413 = vmatpush.msra.mxu0 %v169
    %414 = vmatpush.msra.mxu0 %v168
    %415 = vmatpush.msra.mxu0 %v167
    %416 = vmatpush.msra.mxu0 %v166
    %417 = vmatpush.msra.mxu0 %v165
    %418 = vmatpush.msra.mxu0 %v164
    %419 = vmatpush.msra.mxu0 %v163
    %420 = vmatpush.msra.mxu0 %v162
    %421 = vmatmul.f32.gmra.mxu0 %v401
    %v422 = vpop.f32.mrf.mxu0
    %v423 = vadd.f32 %v403, %v422
    %424 = vdwg.mxu0
    %v425 = vmax.f32 %v423, 0.0
    %v427 = vperm.slane %v247, 0
    %v428 = vperm.slane %v247, 1
    %431 = vmatpush.msra.mxu0 %v240
    %432 = vmatpush.msra.mxu0 %v238
    %433 = vmatpush.msra.mxu0 %v236
    %434 = vmatpush.msra.mxu0 %v234
    %435 = vmatpush.msra.mxu0 %v232
    %436 = vmatpush.msra.mxu0 %v230
    %437 = vmatpush.msra.mxu0 %v228
    %438 = vmatpush.msra.mxu0 %v226
    %439 = vmatpush.msra.mxu0 %v224
    %440 = vmatpush.msra.mxu0 %v222
    %441 = vmatpush.msra.mxu0 %v220
    %442 = vmatpush.msra.mxu0 %v218
    %443 = vmatpush.msra.mxu0 %v216
    %444 = vmatpush.msra.mxu0 %v214
    %445 = vmatpush.msra.mxu0 %v212
    %446 = vmatpush.msra.mxu0 %v210
    %447 = vmatmul.f32.gmra.mxu0 %v425
    %v448 = vpop.f32.mrf.mxu0
    %v449 = vadd.f32 %v427, %v448
    %450 = vdwg.mxu0
    %451 = vmatpush.msra.mxu0 %v241
    %452 = vmatpush.msra.mxu0 %v239
    %453 = vmatpush.msra.mxu0 %v237
    %454 = vmatpush.msra.mxu0 %v235
    %455 = vmatpush.msra.mxu0 %v233
    %456 = vmatpush.msra.mxu0 %v231
    %457 = vmatpush.msra.mxu0 %v229
    %458 = vmatpush.msra.mxu0 %v227
    %459 = vmatpush.msra.mxu0 %v225
    %460 = vmatpush.msra.mxu0 %v223
    %461 = vmatpush.msra.mxu0 %v221
    %462 = vmatpush.msra.mxu0 %v219
    %463 = vmatpush.msra.mxu0 %v217
    %464 = vmatpush.msra.mxu0 %v215
    %465 = vmatpush.msra.mxu0 %v213
    %466 = vmatpush.msra.mxu0 %v211
    %467 = vmatmul.f32.gmra.mxu0 %v425
    %v468 = vpop.f32.mrf.mxu0
    %v469 = vadd.f32 %v428, %v468
    %470 = vdwg.mxu0
    %471 = vst [vmem:[#allocation11] sm:$0xff] %v449
    %472 = vst [vmem:[#allocation11 + $0x8] sm:$0xff] %v469
    // Predicated region
    $region42: #{tpu_custom_call.1} parent=1 // pred_check
      _
    $region43: #{tpu_custom_call.1} parent=1 // pred_check_branch
      %474 = sbr.rel (0) target = $region45
    $region44: #{tpu_custom_call.1} parent=1 // pred_region
      %476 = vsyncadd [#allocation4], 0
      %s478 = sshll.u32 [#allocation11], 4
      %s479 = int_to_ptr.vmem [resolvable:$true] %s478
      %s480 = sshll.u32 %s5, 4
      %s481 = int_to_ptr.hbm [resolvable:$true] %s480
      %483 = dma.vmem_to_hbm [thread:$0]  %s479, 256, %s481, [#allocation4]
    $region45: #{tpu_custom_call.1} parent=1 // pred_fallthru
      _
    // Predicated region
    $region46: #{tpu_custom_call.1} parent=1 // pred_check
      _
    $region47: #{tpu_custom_call.1} parent=1 // pred_check_branch
      %485 = sbr.rel (0) target = $region49
    $region48: #{tpu_custom_call.1} parent=1 // pred_region
      %487 = vsyncadd [#allocation13], 0
      %s489 = sshll.u32 [#allocation12], 4
      %s490 = int_to_ptr.vmem [resolvable:$true] %s489
      %s491 = sshll.u32 %s6, 4
      %s492 = int_to_ptr.hbm [resolvable:$true] %s491
      %494 = dma.vmem_to_hbm [thread:$0]  %s490, 16, %s492, [#allocation13]
    $region49: #{tpu_custom_call.1} parent=1 // pred_fallthru
      _
    // Predicated region
    $region50: #{tpu_custom_call.1} parent=1 // pred_check
      _
    $region51: #{tpu_custom_call.1} parent=1 // pred_check_branch
      %496 = sbr.rel (0) target = $region53
    $region52: #{tpu_custom_call.1} parent=1 // pred_region
      %498 = dma.done [#allocation4], 256
    $region53: #{tpu_custom_call.1} parent=1 // pred_fallthru
      _
    // Predicated region
    $region54: #{tpu_custom_call.1} parent=1 // pred_check
      _
    $region55: #{tpu_custom_call.1} parent=1 // pred_check_branch
      %500 = sbr.rel (0) target = $region57
    $region56: #{tpu_custom_call.1} parent=1 // pred_region
      %502 = dma.done [#allocation13], 16
    $region57: #{tpu_custom_call.1} parent=1 // pred_fallthru
      _
    %503 = vsyncpa [#allocation3], 1
    %504 = vsyncpa [#allocation6], 1
    %505 = vsyncpa [#allocation9], 1
    %506 = vsyncpa [#allocation4], 1
    %507 = vsyncpa [#allocation13], 1

</llo_original>
